<compile_context>
chip_gen: v5e
topology: v5e:2x2
jax: 0.10.0
libtpu: 0.0.40
codegen_flags: <defaults>
</compile_context>

<pallas_src>
import jax
import jax.numpy as jnp
import numpy as np
from jax.experimental import pallas as pl
from jax.experimental.pallas import tpu as pltpu

# --- cfg.MODEL.ROI_HEADS.* defaults (FsDet / Detectron2) -----------------------
NUM_CLASSES = 20             # cfg.MODEL.ROI_HEADS.NUM_CLASSES
IOU_THRESHOLD = 0.5          # cfg.MODEL.ROI_HEADS.IOU_THRESHOLDS = [0.5]
#   cfg.MODEL.ROI_HEADS.IOU_LABELS = [0, 1], allow_low_quality_matches=False
BATCH_SIZE_PER_IMAGE = 64    # used only by the stochastic subsampler (see TODO)
POSITIVE_FRACTION = 0.25

# Packing constants for the fused (tie-break + class gather) min-reduce:
# key = gt_index * _IDX_SHIFT + gt_class; min over gt picks the smallest tied gt
# index (first-max tie-break) while carrying that gt's class in the low bits.
_CLS_BITS = max((NUM_CLASSES - 1).bit_length(), 1)   # 5 bits for classes 0..19
_IDX_SHIFT = 1 << _CLS_BITS                           # 32 > NUM_CLASSES


# Layout: gt slab is [M, 8] f32 (boxes cols 0-3, class col 4, padding cols 5-7)
# with the gt index on the sublane axis; proposal boxes are [4, N] f32 so
# proposals run along the 128-wide lane axis.  The IoU matrix is therefore
# [M (sublane), N (lane)] and both reductions are over the sublane axis.
def _roi_match_kernel(gt_ref, prop_ref, out_ref):
    Bg, M, _ = gt_ref.shape
    N = prop_ref.shape[2]

    for g in range(Bg):                      # Bg is a small compile-time constant
        gt = gt_ref[g]                       # [M, 8] float32
        pt = prop_ref[g]                     # [4, N] float32

        gx0 = gt[:, 0:1]; gy0 = gt[:, 1:2]; gx1 = gt[:, 2:3]; gy1 = gt[:, 3:4]  # [M,1]
        gcls = gt[:, 4:5].astype(jnp.int32)                                     # [M,1]
        px0 = pt[0:1, :]; py0 = pt[1:2, :]; px1 = pt[2:3, :]; py1 = pt[3:4, :]  # [1,N]

        area_g = (gx1 - gx0) * (gy1 - gy0)   # [M,1]
        area_p = (px1 - px0) * (py1 - py0)   # [1,N]

        # pairwise intersection / union  -> [M, N]
        iw = jnp.maximum(jnp.minimum(gx1, px1) - jnp.maximum(gx0, px0), 0.0)
        ih = jnp.maximum(jnp.minimum(gy1, py1) - jnp.maximum(gy0, py0), 0.0)
        inter = iw * ih
        union = area_g + area_p - inter      # union >= inter, so the eps guard
        iou = inter / jnp.maximum(union, 1e-9)   # only fires for 0-area pairs (0/0 -> 0)

        # Matcher: one max reduce for the match quality, one packed min reduce
        # fusing the first-max tie-break with the gt-class gather.
        max_vals = jnp.max(iou, axis=0, keepdims=True)                       # [1,N]
        gt_ids = jax.lax.broadcasted_iota(jnp.int32, (M, N), 0)
        key = jnp.where(iou == max_vals, gt_ids * _IDX_SHIFT + gcls,
                        M * _IDX_SHIFT)                                       # [M,N]
        packed = jnp.min(key, axis=0, keepdims=True)                          # [1,N]
        matched_idxs = packed >> _CLS_BITS                                    # [1,N]
        cls_gather = packed & (_IDX_SHIFT - 1)                                # [1,N]

        # IOU_LABELS = [0, 1] over thresholds [-inf, 0.5, inf]
        matched_labels = (max_vals >= IOU_THRESHOLD).astype(jnp.int32)        # [1,N]
        # background label where matched_labels == 0
        cls_out = jnp.where(matched_labels == 0, NUM_CLASSES, cls_gather)     # [1,N]

        # Pack all int outputs into one lane-dense, sublane-aligned [8, N] slab:
        # row 0 = matched_idxs, row 1 = matched_labels, row 2 = gt class, rest 0.
        rows = jax.lax.broadcasted_iota(jnp.int32, (8, N), 0)
        slab = jnp.where(rows == 0, matched_idxs,
               jnp.where(rows == 1, matched_labels,
               jnp.where(rows == 2, cls_out, 0)))
        out_ref[g] = slab


def roi_heads_label_proposals(gt_boxes, gt_classes, proposal_boxes_t,
                              *, images_per_step=None):
    """
    Args:
      gt_boxes:         [B, M, 4] float32 XYXY ground-truth boxes (M >= 1; padded
                        gt rows must have zero area so their IoU is 0)
      gt_classes:       [B, M]    int32   ground-truth classes in [0, NUM_CLASSES)
      proposal_boxes_t: [B, 4, N] float32 XYXY proposal boxes, coordinate-major
                        (emit this layout from the RPN/proposal producer)
    Returns:
      matched_idxs   [B, N] int32  (best gt index per proposal)
      matched_labels [B, N] int32  (1 = fg, 0 = bg)
      gt_cls_per_box [B, N] int32  (class label; NUM_CLASSES = background)
    """
    B, M, _ = gt_boxes.shape
    N = proposal_boxes_t.shape[2]

    if images_per_step is None:
        # Fewer, fatter grid steps amortize the ~600-cycle per-step overhead, but
        # keep >= 2 parallel steps when possible so both v7x TensorCores get work.
        images_per_step = max(1, B // 2)
        while B % images_per_step:
            images_per_step -= 1
    assert B % images_per_step == 0
    grid_b = B // images_per_step

    # gt slab: boxes in cols 0-3, class (as float, exact for small ints) in col 4.
    gt_slab = jnp.concatenate(
        [gt_boxes.astype(jnp.float32),
         gt_classes.astype(jnp.float32)[..., None],
         jnp.zeros((B, M, 3), jnp.float32)], axis=-1)                 # [B, M, 8]

    out_shape = jax.ShapeDtypeStruct((B, 8, N), jnp.int32)
    grid_spec = pltpu.PrefetchScalarGridSpec(
        num_scalar_prefetch=0,
        grid=(grid_b,),
        in_specs=[
            pl.BlockSpec((images_per_step, M, 8), lambda b: (b, 0, 0)),
            pl.BlockSpec((images_per_step, 4, N), lambda b: (b, 0, 0)),
        ],
        out_specs=pl.BlockSpec((images_per_step, 8, N), lambda b: (b, 0, 0)),
    )
    packed = pl.pallas_call(
        _roi_match_kernel,
        out_shape=out_shape,
        grid_spec=grid_spec,
        compiler_params=pltpu.CompilerParams(
            dimension_semantics=("parallel",)),
    )(gt_slab, proposal_boxes_t.astype(jnp.float32))

    matched_idxs = packed[:, 0, :]
    matched_labels = packed[:, 1, :]
    gt_cls_per_box = packed[:, 2, :]

    # TODO(synk): subsample_labels() uses torch.randperm with data-dependent,
    # variable-size outputs (stochastic fg/bg minibatch sampling); no clean
    # fixed-shape Pallas equivalent — the full per-proposal labeling is returned.
    return matched_idxs, matched_labels, gt_cls_per_box


def _reference(gt_boxes, gt_classes, proposal_boxes):
    """Plain-JAX reference reproducing pairwise_iou + Matcher + _sample_proposals labeling."""
    g = gt_boxes[:, :, None, :]        # [B,M,1,4]
    p = proposal_boxes[:, None, :, :]  # [B,1,N,4]
    area_g = (g[..., 2] - g[..., 0]) * (g[..., 3] - g[..., 1])
    area_p = (p[..., 2] - p[..., 0]) * (p[..., 3] - p[..., 1])
    iw = jnp.maximum(jnp.minimum(g[..., 2], p[..., 2]) - jnp.maximum(g[..., 0], p[..., 0]), 0.0)
    ih = jnp.maximum(jnp.minimum(g[..., 3], p[..., 3]) - jnp.maximum(g[..., 1], p[..., 1]), 0.0)
    inter = iw * ih
    iou = jnp.where(inter > 0, inter / (area_g + area_p - inter), 0.0)   # [B,M,N]
    matched_idxs = jnp.argmax(iou, axis=1)                               # [B,N]
    matched_vals = jnp.max(iou, axis=1)
    matched_labels = (matched_vals >= IOU_THRESHOLD).astype(jnp.int32)
    cls = jnp.take_along_axis(gt_classes, matched_idxs, axis=1)
    cls = jnp.where(matched_labels == 0, NUM_CLASSES, cls)
    return matched_idxs.astype(jnp.int32), matched_labels, cls.astype(jnp.int32)


def _make_boxes(key, b, n, img_size=256.0):
    kc, ks = jax.random.split(key)
    ctr = jax.random.uniform(kc, (b, n, 2), minval=16.0, maxval=img_size - 16.0)
    wh = jax.random.uniform(ks, (b, n, 2), minval=8.0, maxval=96.0)
    x0y0 = jnp.clip(ctr - wh / 2, 0.0, img_size)
    x1y1 = jnp.clip(ctr + wh / 2, 0.0, img_size)
    return jnp.concatenate([x0y0, x1y1], axis=-1).astype(jnp.float32)    # XYXY


if __name__ == "__main__":
    B, M, N = 4, 8, 128   # images, gt boxes per image, proposals per image
    key = jax.random.PRNGKey(0)
    k_gt, k_pr, k_cls = jax.random.split(key, 3)

    gt_boxes = _make_boxes(k_gt, B, M)                       # [B, M, 4]
    proposal_boxes = _make_boxes(k_pr, B, N)                 # [B, N, 4]
    gt_classes = jax.random.randint(k_cls, (B, M), 0, NUM_CLASSES, dtype=jnp.int32)

    # In a real pipeline the RPN / proposal producer would emit this layout
    # directly; the transpose here only exists because the demo generator is N-major.
    proposal_boxes_t = jnp.transpose(proposal_boxes, (0, 2, 1))   # [B, 4, N]

    midx, mlbl, mcls = roi_heads_label_proposals(gt_boxes, gt_classes, proposal_boxes_t)
    jax.block_until_ready((midx, mlbl, mcls))

    # correctness check vs plain-JAX reference
    r_idx, r_lbl, r_cls = _reference(gt_boxes, gt_classes, proposal_boxes)
    np.testing.assert_array_equal(np.asarray(midx), np.asarray(r_idx))
    np.testing.assert_array_equal(np.asarray(mlbl), np.asarray(r_lbl))
    np.testing.assert_array_equal(np.asarray(mcls), np.asarray(r_cls))

    print("KERNEL_OK")
</pallas_src>

<mosaic_0001>
module attributes {stable_mosaic.version = 11 : i64} {
  func.func @_roi_match_kernel(%arg0: i32, %arg1: memref<2x8x8xf32, #tpu.memory_space<vmem>>, %arg2: memref<2x4x128xf32, #tpu.memory_space<vmem>>, %arg3: memref<2x8x128xi32, #tpu.memory_space<vmem>>) attributes {dimension_semantics = [#tpu.dimension_semantics<parallel>], iteration_bounds = array<i64: 2>, scalar_prefetch = 0 : i64, scratch_operands = 0 : i64, tpu.core_type = #tpu.core_type<tc>, window_params = [{transform_indices = @transform_0, window_bounds = array<i64: 2, 8, 8>}, {transform_indices = @transform_1, window_bounds = array<i64: 2, 4, 128>}, {transform_indices = @transform_2, window_bounds = array<i64: 2, 8, 128>}]} {
    %c0 = arith.constant 0 : index
    %c0_0 = arith.constant 0 : index
    %c0_1 = arith.constant 0 : index
    %0 = vector.load %arg1[%c0, %c0_0, %c0_1] : memref<2x8x8xf32, #tpu.memory_space<vmem>>, vector<1x8x8xf32>
    %1 = vector.shape_cast %0 : vector<1x8x8xf32> to vector<8x8xf32>
    %c0_2 = arith.constant 0 : index
    %c0_3 = arith.constant 0 : index
    %c0_4 = arith.constant 0 : index
    %2 = vector.load %arg2[%c0_2, %c0_3, %c0_4] : memref<2x4x128xf32, #tpu.memory_space<vmem>>, vector<1x4x128xf32>
    %3 = vector.shape_cast %2 : vector<1x4x128xf32> to vector<4x128xf32>
    %4 = vector.extract_strided_slice %1 {offsets = [0, 0], sizes = [8, 1], strides = [1, 1]} : vector<8x8xf32> to vector<8x1xf32>
    %5 = vector.extract_strided_slice %1 {offsets = [0, 1], sizes = [8, 1], strides = [1, 1]} : vector<8x8xf32> to vector<8x1xf32>
    %6 = vector.extract_strided_slice %1 {offsets = [0, 2], sizes = [8, 1], strides = [1, 1]} : vector<8x8xf32> to vector<8x1xf32>
    %7 = vector.extract_strided_slice %1 {offsets = [0, 3], sizes = [8, 1], strides = [1, 1]} : vector<8x8xf32> to vector<8x1xf32>
    %8 = vector.extract_strided_slice %1 {offsets = [0, 4], sizes = [8, 1], strides = [1, 1]} : vector<8x8xf32> to vector<8x1xf32>
    %9 = arith.fptosi %8 : vector<8x1xf32> to vector<8x1xi32>
    %10 = vector.extract_strided_slice %3 {offsets = [0, 0], sizes = [1, 128], strides = [1, 1]} : vector<4x128xf32> to vector<1x128xf32>
    %11 = vector.extract_strided_slice %3 {offsets = [1, 0], sizes = [1, 128], strides = [1, 1]} : vector<4x128xf32> to vector<1x128xf32>
    %12 = vector.extract_strided_slice %3 {offsets = [2, 0], sizes = [1, 128], strides = [1, 1]} : vector<4x128xf32> to vector<1x128xf32>
    %13 = vector.extract_strided_slice %3 {offsets = [3, 0], sizes = [1, 128], strides = [1, 1]} : vector<4x128xf32> to vector<1x128xf32>
    %14 = arith.subf %6, %4 : vector<8x1xf32>
    %15 = arith.subf %7, %5 : vector<8x1xf32>
    %16 = arith.mulf %14, %15 : vector<8x1xf32>
    %17 = arith.subf %12, %10 : vector<1x128xf32>
    %18 = arith.subf %13, %11 : vector<1x128xf32>
    %19 = arith.mulf %17, %18 : vector<1x128xf32>
    %20 = vector.broadcast %6 : vector<8x1xf32> to vector<8x128xf32>
    %21 = vector.broadcast %12 : vector<1x128xf32> to vector<8x128xf32>
    %22 = arith.minimumf %20, %21 : vector<8x128xf32>
    %23 = vector.broadcast %4 : vector<8x1xf32> to vector<8x128xf32>
    %24 = vector.broadcast %10 : vector<1x128xf32> to vector<8x128xf32>
    %25 = arith.maximumf %23, %24 : vector<8x128xf32>
    %26 = arith.subf %22, %25 : vector<8x128xf32>
    %cst = arith.constant 0.000000e+00 : f32
    %27 = vector.broadcast %cst : f32 to vector<8x128xf32>
    %28 = arith.maximumf %26, %27 : vector<8x128xf32>
    %29 = vector.broadcast %7 : vector<8x1xf32> to vector<8x128xf32>
    %30 = vector.broadcast %13 : vector<1x128xf32> to vector<8x128xf32>
    %31 = arith.minimumf %29, %30 : vector<8x128xf32>
    %32 = vector.broadcast %5 : vector<8x1xf32> to vector<8x128xf32>
    %33 = vector.broadcast %11 : vector<1x128xf32> to vector<8x128xf32>
    %34 = arith.maximumf %32, %33 : vector<8x128xf32>
    %35 = arith.subf %31, %34 : vector<8x128xf32>
    %cst_5 = arith.constant 0.000000e+00 : f32
    %36 = vector.broadcast %cst_5 : f32 to vector<8x128xf32>
    %37 = arith.maximumf %35, %36 : vector<8x128xf32>
    %38 = arith.mulf %28, %37 : vector<8x128xf32>
    %39 = vector.broadcast %16 : vector<8x1xf32> to vector<8x128xf32>
    %40 = vector.broadcast %19 : vector<1x128xf32> to vector<8x128xf32>
    %41 = arith.addf %39, %40 : vector<8x128xf32>
    %42 = arith.subf %41, %38 : vector<8x128xf32>
    %cst_6 = arith.constant 9.99999971E-10 : f32
    %43 = vector.broadcast %cst_6 : f32 to vector<8x128xf32>
    %44 = arith.maximumf %42, %43 : vector<8x128xf32>
    %45 = arith.divf %38, %44 : vector<8x128xf32>
    %cst_7 = arith.constant dense<0xFF800000> : vector<128xf32>
    %46 = vector.multi_reduction <maximumf>, %45, %cst_7 [0] : vector<8x128xf32> to vector<128xf32>
    %47 = vector.shape_cast %46 : vector<128xf32> to vector<1x128xf32>
    %48 = tpu.iota {dimensions = array<i32: 0>} : vector<8x128xi32>
    %49 = vector.broadcast %47 : vector<1x128xf32> to vector<8x128xf32>
    %50 = arith.cmpf oeq, %45, %49 : vector<8x128xf32>
    %c32_i32 = arith.constant 32 : i32
    %51 = vector.broadcast %c32_i32 : i32 to vector<8x128xi32>
    %52 = arith.muli %48, %51 : vector<8x128xi32>
    %53 = vector.broadcast %9 : vector<8x1xi32> to vector<8x128xi32>
    %54 = arith.addi %52, %53 : vector<8x128xi32>
    %c256_i32 = arith.constant 256 : i32
    %55 = vector.broadcast %c256_i32 : i32 to vector<8x128xi32>
    %56 = arith.select %50, %54, %55 : vector<8x128xi1>, vector<8x128xi32>
    %cst_8 = arith.constant dense<2147483647> : vector<128xi32>
    %57 = vector.multi_reduction <minsi>, %56, %cst_8 [0] : vector<8x128xi32> to vector<128xi32>
    %58 = vector.shape_cast %57 : vector<128xi32> to vector<1x128xi32>
    %c5_i32 = arith.constant 5 : i32
    %59 = vector.broadcast %c5_i32 : i32 to vector<1x128xi32>
    %60 = arith.shrsi %58, %59 : vector<1x128xi32>
    %c31_i32 = arith.constant 31 : i32
    %61 = vector.broadcast %c31_i32 : i32 to vector<1x128xi32>
    %62 = arith.andi %58, %61 : vector<1x128xi32>
    %cst_9 = arith.constant 5.000000e-01 : f32
    %63 = vector.broadcast %cst_9 : f32 to vector<1x128xf32>
    %64 = arith.cmpf oge, %47, %63 : vector<1x128xf32>
    %65 = arith.extui %64 : vector<1x128xi1> to vector<1x128xi32>
    %c0_i32 = arith.constant 0 : i32
    %66 = vector.broadcast %c0_i32 : i32 to vector<1x128xi32>
    %67 = arith.cmpi eq, %65, %66 : vector<1x128xi32>
    %c20_i32 = arith.constant 20 : i32
    %68 = vector.broadcast %c20_i32 : i32 to vector<1x128xi32>
    %69 = arith.select %67, %68, %62 : vector<1x128xi1>, vector<1x128xi32>
    %70 = tpu.iota {dimensions = array<i32: 0>} : vector<8x128xi32>
    %c0_i32_10 = arith.constant 0 : i32
    %71 = vector.broadcast %c0_i32_10 : i32 to vector<8x128xi32>
    %72 = arith.cmpi eq, %70, %71 : vector<8x128xi32>
    %c1_i32 = arith.constant 1 : i32
    %73 = vector.broadcast %c1_i32 : i32 to vector<8x128xi32>
    %74 = arith.cmpi eq, %70, %73 : vector<8x128xi32>
    %c2_i32 = arith.constant 2 : i32
    %75 = vector.broadcast %c2_i32 : i32 to vector<8x128xi32>
    %76 = arith.cmpi eq, %70, %75 : vector<8x128xi32>
    %c0_i32_11 = arith.constant 0 : i32
    %77 = vector.shape_cast %69 : vector<1x128xi32> to vector<1x128xi32>
    %78 = vector.broadcast %77 : vector<1x128xi32> to vector<8x128xi32>
    %79 = vector.broadcast %c0_i32_11 : i32 to vector<8x128xi32>
    %80 = arith.select %76, %78, %79 : vector<8x128xi1>, vector<8x128xi32>
    %81 = vector.shape_cast %65 : vector<1x128xi32> to vector<1x128xi32>
    %82 = vector.broadcast %81 : vector<1x128xi32> to vector<8x128xi32>
    %83 = arith.select %74, %82, %80 : vector<8x128xi1>, vector<8x128xi32>
    %84 = vector.shape_cast %60 : vector<1x128xi32> to vector<1x128xi32>
    %85 = vector.broadcast %84 : vector<1x128xi32> to vector<8x128xi32>
    %86 = arith.select %72, %85, %83 : vector<8x128xi1>, vector<8x128xi32>
    %c0_12 = arith.constant 0 : index
    %c0_13 = arith.constant 0 : index
    %c0_14 = arith.constant 0 : index
    %87 = vector.load %arg3[%c0_12, %c0_13, %c0_14] : memref<2x8x128xi32, #tpu.memory_space<vmem>>, vector<1x8x128xi32>
    %88 = vector.shape_cast %87 : vector<1x8x128xi32> to vector<8x128xi32>
    %89 = vector.shape_cast %86 : vector<8x128xi32> to vector<1x8x128xi32>
    tpu.vector_store %arg3[%c0_12, %c0_13, %c0_14], %89 {strides = array<i32>} : memref<2x8x128xi32, #tpu.memory_space<vmem>>, vector<1x8x128xi32>,
    %c1 = arith.constant 1 : index
    %c0_15 = arith.constant 0 : index
    %c0_16 = arith.constant 0 : index
    %90 = vector.load %arg1[%c1, %c0_15, %c0_16] : memref<2x8x8xf32, #tpu.memory_space<vmem>>, vector<1x8x8xf32>
    %91 = vector.shape_cast %90 : vector<1x8x8xf32> to vector<8x8xf32>
    %c1_17 = arith.constant 1 : index
    %c0_18 = arith.constant 0 : index
    %c0_19 = arith.constant 0 : index
    %92 = vector.load %arg2[%c1_17, %c0_18, %c0_19] : memref<2x4x128xf32, #tpu.memory_space<vmem>>, vector<1x4x128xf32>
    %93 = vector.shape_cast %92 : vector<1x4x128xf32> to vector<4x128xf32>
    %94 = vector.extract_strided_slice %91 {offsets = [0, 0], sizes = [8, 1], strides = [1, 1]} : vector<8x8xf32> to vector<8x1xf32>
    %95 = vector.extract_strided_slice %91 {offsets = [0, 1], sizes = [8, 1], strides = [1, 1]} : vector<8x8xf32> to vector<8x1xf32>
    %96 = vector.extract_strided_slice %91 {offsets = [0, 2], sizes = [8, 1], strides = [1, 1]} : vector<8x8xf32> to vector<8x1xf32>
    %97 = vector.extract_strided_slice %91 {offsets = [0, 3], sizes = [8, 1], strides = [1, 1]} : vector<8x8xf32> to vector<8x1xf32>
    %98 = vector.extract_strided_slice %91 {offsets = [0, 4], sizes = [8, 1], strides = [1, 1]} : vector<8x8xf32> to vector<8x1xf32>
    %99 = arith.fptosi %98 : vector<8x1xf32> to vector<8x1xi32>
    %100 = vector.extract_strided_slice %93 {offsets = [0, 0], sizes = [1, 128], strides = [1, 1]} : vector<4x128xf32> to vector<1x128xf32>
    %101 = vector.extract_strided_slice %93 {offsets = [1, 0], sizes = [1, 128], strides = [1, 1]} : vector<4x128xf32> to vector<1x128xf32>
    %102 = vector.extract_strided_slice %93 {offsets = [2, 0], sizes = [1, 128], strides = [1, 1]} : vector<4x128xf32> to vector<1x128xf32>
    %103 = vector.extract_strided_slice %93 {offsets = [3, 0], sizes = [1, 128], strides = [1, 1]} : vector<4x128xf32> to vector<1x128xf32>
    %104 = arith.subf %96, %94 : vector<8x1xf32>
    %105 = arith.subf %97, %95 : vector<8x1xf32>
    %106 = arith.mulf %104, %105 : vector<8x1xf32>
    %107 = arith.subf %102, %100 : vector<1x128xf32>
    %108 = arith.subf %103, %101 : vector<1x128xf32>
    %109 = arith.mulf %107, %108 : vector<1x128xf32>
    %110 = vector.broadcast %96 : vector<8x1xf32> to vector<8x128xf32>
    %111 = vector.broadcast %102 : vector<1x128xf32> to vector<8x128xf32>
    %112 = arith.minimumf %110, %111 : vector<8x128xf32>
    %113 = vector.broadcast %94 : vector<8x1xf32> to vector<8x128xf32>
    %114 = vector.broadcast %100 : vector<1x128xf32> to vector<8x128xf32>
    %115 = arith.maximumf %113, %114 : vector<8x128xf32>
    %116 = arith.subf %112, %115 : vector<8x128xf32>
    %cst_20 = arith.constant 0.000000e+00 : f32
    %117 = vector.broadcast %cst_20 : f32 to vector<8x128xf32>
    %118 = arith.maximumf %116, %117 : vector<8x128xf32>
    %119 = vector.broadcast %97 : vector<8x1xf32> to vector<8x128xf32>
    %120 = vector.broadcast %103 : vector<1x128xf32> to vector<8x128xf32>
    %121 = arith.minimumf %119, %120 : vector<8x128xf32>
    %122 = vector.broadcast %95 : vector<8x1xf32> to vector<8x128xf32>
    %123 = vector.broadcast %101 : vector<1x128xf32> to vector<8x128xf32>
    %124 = arith.maximumf %122, %123 : vector<8x128xf32>
    %125 = arith.subf %121, %124 : vector<8x128xf32>
    %cst_21 = arith.constant 0.000000e+00 : f32
    %126 = vector.broadcast %cst_21 : f32 to vector<8x128xf32>
    %127 = arith.maximumf %125, %126 : vector<8x128xf32>
    %128 = arith.mulf %118, %127 : vector<8x128xf32>
    %129 = vector.broadcast %106 : vector<8x1xf32> to vector<8x128xf32>
    %130 = vector.broadcast %109 : vector<1x128xf32> to vector<8x128xf32>
    %131 = arith.addf %129, %130 : vector<8x128xf32>
    %132 = arith.subf %131, %128 : vector<8x128xf32>
    %cst_22 = arith.constant 9.99999971E-10 : f32
    %133 = vector.broadcast %cst_22 : f32 to vector<8x128xf32>
    %134 = arith.maximumf %132, %133 : vector<8x128xf32>
    %135 = arith.divf %128, %134 : vector<8x128xf32>
    %cst_23 = arith.constant dense<0xFF800000> : vector<128xf32>
    %136 = vector.multi_reduction <maximumf>, %135, %cst_23 [0] : vector<8x128xf32> to vector<128xf32>
    %137 = vector.shape_cast %136 : vector<128xf32> to vector<1x128xf32>
    %138 = tpu.iota {dimensions = array<i32: 0>} : vector<8x128xi32>
    %139 = vector.broadcast %137 : vector<1x128xf32> to vector<8x128xf32>
    %140 = arith.cmpf oeq, %135, %139 : vector<8x128xf32>
    %c32_i32_24 = arith.constant 32 : i32
    %141 = vector.broadcast %c32_i32_24 : i32 to vector<8x128xi32>
    %142 = arith.muli %138, %141 : vector<8x128xi32>
    %143 = vector.broadcast %99 : vector<8x1xi32> to vector<8x128xi32>
    %144 = arith.addi %142, %143 : vector<8x128xi32>
    %c256_i32_25 = arith.constant 256 : i32
    %145 = vector.broadcast %c256_i32_25 : i32 to vector<8x128xi32>
    %146 = arith.select %140, %144, %145 : vector<8x128xi1>, vector<8x128xi32>
    %cst_26 = arith.constant dense<2147483647> : vector<128xi32>
    %147 = vector.multi_reduction <minsi>, %146, %cst_26 [0] : vector<8x128xi32> to vector<128xi32>
    %148 = vector.shape_cast %147 : vector<128xi32> to vector<1x128xi32>
    %c5_i32_27 = arith.constant 5 : i32
    %149 = vector.broadcast %c5_i32_27 : i32 to vector<1x128xi32>
    %150 = arith.shrsi %148, %149 : vector<1x128xi32>
    %c31_i32_28 = arith.constant 31 : i32
    %151 = vector.broadcast %c31_i32_28 : i32 to vector<1x128xi32>
    %152 = arith.andi %148, %151 : vector<1x128xi32>
    %cst_29 = arith.constant 5.000000e-01 : f32
    %153 = vector.broadcast %cst_29 : f32 to vector<1x128xf32>
    %154 = arith.cmpf oge, %137, %153 : vector<1x128xf32>
    %155 = arith.extui %154 : vector<1x128xi1> to vector<1x128xi32>
    %c0_i32_30 = arith.constant 0 : i32
    %156 = vector.broadcast %c0_i32_30 : i32 to vector<1x128xi32>
    %157 = arith.cmpi eq, %155, %156 : vector<1x128xi32>
    %c20_i32_31 = arith.constant 20 : i32
    %158 = vector.broadcast %c20_i32_31 : i32 to vector<1x128xi32>
    %159 = arith.select %157, %158, %152 : vector<1x128xi1>, vector<1x128xi32>
    %160 = tpu.iota {dimensions = array<i32: 0>} : vector<8x128xi32>
    %c0_i32_32 = arith.constant 0 : i32
    %161 = vector.broadcast %c0_i32_32 : i32 to vector<8x128xi32>
    %162 = arith.cmpi eq, %160, %161 : vector<8x128xi32>
    %c1_i32_33 = arith.constant 1 : i32
    %163 = vector.broadcast %c1_i32_33 : i32 to vector<8x128xi32>
    %164 = arith.cmpi eq, %160, %163 : vector<8x128xi32>
    %c2_i32_34 = arith.constant 2 : i32
    %165 = vector.broadcast %c2_i32_34 : i32 to vector<8x128xi32>
    %166 = arith.cmpi eq, %160, %165 : vector<8x128xi32>
    %c0_i32_35 = arith.constant 0 : i32
    %167 = vector.shape_cast %159 : vector<1x128xi32> to vector<1x128xi32>
    %168 = vector.broadcast %167 : vector<1x128xi32> to vector<8x128xi32>
    %169 = vector.broadcast %c0_i32_35 : i32 to vector<8x128xi32>
    %170 = arith.select %166, %168, %169 : vector<8x128xi1>, vector<8x128xi32>
    %171 = vector.shape_cast %155 : vector<1x128xi32> to vector<1x128xi32>
    %172 = vector.broadcast %171 : vector<1x128xi32> to vector<8x128xi32>
    %173 = arith.select %164, %172, %170 : vector<8x128xi1>, vector<8x128xi32>
    %174 = vector.shape_cast %150 : vector<1x128xi32> to vector<1x128xi32>
    %175 = vector.broadcast %174 : vector<1x128xi32> to vector<8x128xi32>
    %176 = arith.select %162, %175, %173 : vector<8x128xi1>, vector<8x128xi32>
    %c1_36 = arith.constant 1 : index
    %c0_37 = arith.constant 0 : index
    %c0_38 = arith.constant 0 : index
    %177 = vector.load %arg3[%c1_36, %c0_37, %c0_38] : memref<2x8x128xi32, #tpu.memory_space<vmem>>, vector<1x8x128xi32>
    %178 = vector.shape_cast %177 : vector<1x8x128xi32> to vector<8x128xi32>
    %179 = vector.shape_cast %176 : vector<8x128xi32> to vector<1x8x128xi32>
    tpu.vector_store %arg3[%c1_36, %c0_37, %c0_38], %179 {strides = array<i32>} : memref<2x8x128xi32, #tpu.memory_space<vmem>>, vector<1x8x128xi32>,
    return
  }
  func.func @transform_0(%arg0: i32) -> (i32, i32, i32) {
    %c0_i32 = arith.constant 0 : i32
    %c0_i32_0 = arith.constant 0 : i32
    %c0_i32_1 = arith.constant 0 : i32
    return %arg0, %c0_i32, %c0_i32_0 : i32, i32, i32
  }
  func.func @transform_1(%arg0: i32) -> (i32, i32, i32) {
    %c0_i32 = arith.constant 0 : i32
    %c0_i32_0 = arith.constant 0 : i32
    %c0_i32_1 = arith.constant 0 : i32
    return %arg0, %c0_i32, %c0_i32_0 : i32, i32, i32
  }
  func.func @transform_2(%arg0: i32) -> (i32, i32, i32) {
    %c0_i32 = arith.constant 0 : i32
    %c0_i32_0 = arith.constant 0 : i32
    %c0_i32_1 = arith.constant 0 : i32
    return %arg0, %c0_i32, %c0_i32_0 : i32, i32, i32
  }
}

</mosaic_0001>

<llo_original>
// kernel: tpu_custom_call.1
$region0: #{tpu_custom_call.1}
  #allocation0 [shape = 'u32[]', space=smem, size = 0x4, offset = 0x4, fixed_abs, tag = 'smem constant byte address 0x4 - core index']
  #allocation1 [shape = 'u32[72,128]{1,0:T(1,128)}', space=vmem, size = 0x9000, scoped, tag = 'internal scratch']
  %s0 = inlined_call_operand.hbm [shape: f32[4,8,8], index: 0, kind: input, shape index: {}]
  %s1 = inlined_call_operand.hbm [shape: f32[4,4,128], index: 1, kind: input, shape index: {}]
  %s2 = inlined_call_operand.hbm [shape: s32[4,8,128], index: 2, kind: output, shape index: {}]
  %s3 = sld [smem:[#allocation0]]
  $region49: #{tpu_custom_call.1} parent=0
    _
  %s5 = ssub.s32 1, %s3
  %s6 = scalar_select 0, %s5, %s3
  $region1: #{tpu_custom_call.1} parent=0
    #allocation2 [shape = 'u8[16384]{0}', space=vmem, size = 0x4000, scoped, tag = 'input window, operand 0']
    #allocation3 [shape = 's32[2]{0}', space=sflag, size = 0x8, scoped, tag = 'scoped memory for tpu_custom_call.1']
    #allocation4 [shape = 's32[2]{0}', space=sflag, size = 0x8, scoped, tag = 'scoped memory for tpu_custom_call.1']
    #allocation5 [shape = 'u8[8192]{0}', space=vmem, size = 0x2000, scoped, tag = 'input window, operand 1']
    #allocation6 [shape = 's32[2]{0}', space=sflag, size = 0x8, scoped, tag = 'scoped memory for tpu_custom_call.1']
    #allocation7 [shape = 'u8[16384]{0}', space=vmem, size = 0x4000, scoped, tag = 'output window, operand 0']
    %7 = vsyncpa [#allocation3], 0
    %s8 = scalar_lea.sflag [#allocation3], 1
    %9 = vsyncpa %s8, 0
    %10 = vsyncpa [#allocation6], 0
    %s11 = scalar_lea.sflag [#allocation6], 1
    %12 = vsyncpa %s11, 0
    %13 = vsyncpa [#allocation4], 0
    %s14 = scalar_lea.sflag [#allocation4], 1
    %15 = vsyncpa %s14, 0
    loop: start=0, step=1, limit=4
    $region2: #{tpu_custom_call.1} parent=1 // loop_pre_header
      _
    $region3: #{tpu_custom_call.1} parent=1 // loop_header
      %s17 = sphi 0, %s21
      %p18 = scmp.ge.s32.totalorder %s17, 4
      %s27 = sphi 0, %s29
      %s30 = sphi 0, %s27
      %s31 = sphi 0, %s30
      %s47 = sphi 0, %s31
      %s53 = sphi 0, %s55
      %s56 = sphi 0, %s53
      %s57 = sphi 0, %s56
      %s73 = sphi 0, %s57
      %s79 = sphi 0, %s81
      %s82 = sphi 0, %s79
      %s83 = sphi 0, %s82
      %s99 = sphi 0, %s83
    $region4: #{tpu_custom_call.1} parent=1 // loop_header_branch
      %20 = sbr.rel (%p18) target = $region8
    $region5: #{tpu_custom_call.1} parent=1 // loop_body
      %s22 = ssub.s32 %s17, 1
      %s23 = ssub.s32 %s17, 2
      %s24 = sadd.s32 %s17, 1
      %s25 = ssub.s32 %s17, %s24
      %p26 = scmp.eq.s32.totalorder %s25, 0
      %s28 = sadd.s32 %s27, 1
      %s29 = scalar_select %p26, %s27, %s28
      %p32 = pneg %p26
      %p33 = scmp.eq.s32.totalorder %s17, 1
      %p34 = por %p32, %p33
      %p35 = scmp.ne.s32.totalorder %s27, %s30
      %p36 = scmp.eq.s32.totalorder %s17, 0
      %p37 = por %p35, %p36
      %p38 = scmp.ne.s32.totalorder %s27, %s30
      %p39 = scmp.eq.s32.totalorder %s22, 1
      %p40 = por %p38, %p39
      %p41 = scmp.ne.s32.totalorder %s30, %s31
      %p42 = scmp.eq.s32.totalorder %s22, 0
      %p43 = por %p41, %p42
      %p44 = scmp.ne.s32.totalorder %s30, %s31
      %p45 = scmp.eq.s32.totalorder %s23, 1
      %p46 = por %p44, %p45
      %p48 = scmp.ne.s32.totalorder %s31, %s47
      %p49 = scmp.eq.s32.totalorder %s23, 0
      %p50 = por %p48, %p49
      %s51 = ssub.s32 %s17, %s24
      %p52 = scmp.eq.s32.totalorder %s51, 0
      %s54 = sadd.s32 %s53, 1
      %s55 = scalar_select %p52, %s53, %s54
      %p58 = pneg %p52
      %p59 = scmp.eq.s32.totalorder %s17, 1
      %p60 = por %p58, %p59
      %p61 = scmp.ne.s32.totalorder %s53, %s56
      %p62 = scmp.eq.s32.totalorder %s17, 0
      %p63 = por %p61, %p62
      %p64 = scmp.ne.s32.totalorder %s53, %s56
      %p65 = scmp.eq.s32.totalorder %s22, 1
      %p66 = por %p64, %p65
      %p67 = scmp.ne.s32.totalorder %s56, %s57
      %p68 = scmp.eq.s32.totalorder %s22, 0
      %p69 = por %p67, %p68
      %p70 = scmp.ne.s32.totalorder %s56, %s57
      %p71 = scmp.eq.s32.totalorder %s23, 1
      %p72 = por %p70, %p71
      %p74 = scmp.ne.s32.totalorder %s57, %s73
      %p75 = scmp.eq.s32.totalorder %s23, 0
      %p76 = por %p74, %p75
      %s77 = ssub.s32 %s17, %s24
      %p78 = scmp.eq.s32.totalorder %s77, 0
      %s80 = sadd.s32 %s79, 1
      %s81 = scalar_select %p78, %s79, %s80
      %p84 = pneg %p78
      %p85 = scmp.eq.s32.totalorder %s17, 1
      %p86 = por %p84, %p85
      %p87 = scmp.ne.s32.totalorder %s79, %s82
      %p88 = scmp.eq.s32.totalorder %s17, 0
      %p89 = por %p87, %p88
      %p90 = scmp.ne.s32.totalorder %s79, %s82
      %p91 = scmp.eq.s32.totalorder %s22, 1
      %p92 = por %p90, %p91
      %p93 = scmp.ne.s32.totalorder %s82, %s83
      %p94 = scmp.eq.s32.totalorder %s22, 0
      %p95 = por %p93, %p94
      %p96 = scmp.ne.s32.totalorder %s82, %s83
      %p97 = scmp.eq.s32.totalorder %s23, 1
      %p98 = por %p96, %p97
      %p100 = scmp.ne.s32.totalorder %s83, %s99
      %p101 = scmp.eq.s32.totalorder %s23, 0
      %p102 = por %p100, %p101
      %p103 = scmp.le.s32.totalorder 1, %s17
      %p104 = scmp.lt.s32.totalorder %s17, 3
      %p105 = pnand %p103, %p104
      %p106 = pneg %p105
      // Predicated region
      $region9: #{tpu_custom_call.1} parent=5 // pred_check
        _
      $region10: #{tpu_custom_call.1} parent=5 // pred_check_branch
        %108 = sbr.rel (%p105) target = $region12
      $region11: #{tpu_custom_call.1} parent=5 // pred_region
        %s109 = ssub.s32 %s17, 1
      $region12: #{tpu_custom_call.1} parent=5 // pred_fallthru
        _
      %p110 = scmp.lt.s32.totalorder %s17, 2
      // Predicated region
      $region13: #{tpu_custom_call.1} parent=5 // pred_check
        %p111 = pneg %p110
      $region14: #{tpu_custom_call.1} parent=5 // pred_check_branch
        %113 = sbr.rel (%p111) target = $region16
      $region15: #{tpu_custom_call.1} parent=5 // pred_region
        // Predicated region
        $region17: #{tpu_custom_call.1} parent=15 // pred_check
          %p114 = pneg %p37
        $region18: #{tpu_custom_call.1} parent=15 // pred_check_branch
          %116 = sbr.rel (%p114) target = $region20
        $region19: #{tpu_custom_call.1} parent=15 // pred_region
          %s117 = sand.u32 %s27, 1
          %s118 = scalar_lea.sflag [#allocation3], %s117
          %s119 = sand.u32 %s27, 1
          %s120 = smul.addr %s119, 16
          %s121 = scalar_lea.vmem [#allocation2], %s120
          %s122 = smul.u32 2, %s17
          %124 = vsyncadd %s118, 0
          %s125 = smul.addr %s122, 8
          %s126 = scalar_lea.hbm %s0, %s125
          %s127 = sshll.u32 %s126, 4
          %s128 = int_to_ptr.hbm [resolvable:$true] %s127
          %s129 = sshll.u32 %s121, 4
          %s130 = int_to_ptr.vmem [resolvable:$true] %s129
          %135 = dma.hbm_to_vmem [thread:$0]  %s128, 256, %s130, %s118, 128, 128, 8
        $region20: #{tpu_custom_call.1} parent=15 // pred_fallthru
          _
        // Predicated region
        $region21: #{tpu_custom_call.1} parent=15 // pred_check
          %p136 = pneg %p63
        $region22: #{tpu_custom_call.1} parent=15 // pred_check_branch
          %138 = sbr.rel (%p136) target = $region24
        $region23: #{tpu_custom_call.1} parent=15 // pred_region
          %s139 = sand.u32 %s53, 1
          %s140 = scalar_lea.sflag [#allocation6], %s139
          %s141 = sand.u32 %s53, 1
          %s142 = smul.addr %s141, 8
          %s143 = scalar_lea.vmem [#allocation5], %s142
          %s144 = smul.u32 2, %s17
          %146 = vsyncadd %s140, 0
          %s147 = smul.addr %s144, 4
          %s148 = scalar_lea.hbm %s1, %s147
          %s149 = sshll.u32 %s148, 4
          %s150 = int_to_ptr.hbm [resolvable:$true] %s149
          %s151 = sshll.u32 %s143, 4
          %s152 = int_to_ptr.vmem [resolvable:$true] %s151
          %157 = dma.hbm_to_vmem [thread:$0]  %s150, 128, %s152, %s140, 64, 64, 4
        $region24: #{tpu_custom_call.1} parent=15 // pred_fallthru
          _
      $region16: #{tpu_custom_call.1} parent=5 // pred_fallthru
        _
      %p158 = scmp.le.s32.totalorder 1, %s17
      %p159 = scmp.lt.s32.totalorder %s17, 3
      %p160 = pnand %p158, %p159
      %p161 = pneg %p160
      // Predicated region
      $region25: #{tpu_custom_call.1} parent=5 // pred_check
        _
      $region26: #{tpu_custom_call.1} parent=5 // pred_check_branch
        %163 = sbr.rel (%p160) target = $region28
      $region27: #{tpu_custom_call.1} parent=5 // pred_region
        %s164 = ssub.s32 %s17, 1
        %s165 = sand.u32 %s30, 1
        %s166 = scalar_lea.sflag [#allocation3], %s165
        %s167 = sand.u32 %s30, 1
        %s168 = smul.addr %s167, 16
        %s169 = scalar_lea.vmem [#allocation2], %s168
        // Predicated region
        $region29: #{tpu_custom_call.1} parent=27 // pred_check
          %p170 = pneg %p43
        $region30: #{tpu_custom_call.1} parent=27 // pred_check_branch
          %172 = sbr.rel (%p170) target = $region32
        $region31: #{tpu_custom_call.1} parent=27 // pred_region
          %174 = dma.done %s166, 256
        $region32: #{tpu_custom_call.1} parent=27 // pred_fallthru
          _
        %s175 = sand.u32 %s56, 1
        %s176 = scalar_lea.sflag [#allocation6], %s175
        %s177 = sand.u32 %s56, 1
        %s178 = smul.addr %s177, 8
        %s179 = scalar_lea.vmem [#allocation5], %s178
        // Predicated region
        $region33: #{tpu_custom_call.1} parent=27 // pred_check
          %p180 = pneg %p69
        $region34: #{tpu_custom_call.1} parent=27 // pred_check_branch
          %182 = sbr.rel (%p180) target = $region36
        $region35: #{tpu_custom_call.1} parent=27 // pred_region
          %184 = dma.done %s176, 128
        $region36: #{tpu_custom_call.1} parent=27 // pred_fallthru
          _
        %s185 = sand.u32 %s30, 1
        %s186 = scalar_lea.sflag [#allocation3], %s185
        %s187 = sand.u32 %s30, 1
        %s188 = smul.addr %s187, 16
        %s189 = scalar_lea.vmem [#allocation2], %s188
        %p190 = pneg %p43
        %p191 = pneg %p40
        %s192 = sand.u32 %s56, 1
        %s193 = scalar_lea.sflag [#allocation6], %s192
        %s194 = sand.u32 %s56, 1
        %s195 = smul.addr %s194, 8
        %s196 = scalar_lea.vmem [#allocation5], %s195
        %p197 = pneg %p69
        %p198 = pneg %p66
        %p199 = pneg %p95
        %p200 = pneg %p92
        %s201 = sand.u32 %s82, 1
        %s202 = scalar_lea.sflag [#allocation4], %s201
        %s203 = sand.u32 %s82, 1
        %s204 = smul.addr %s203, 16
        %s205 = scalar_lea.vmem [#allocation7], %s204
        %s206 = smul.u32 2, %s22
        %s207 = smul.u32 2, %s22
        %s208 = smul.u32 2, %s22
        %v209 = vld [vmem:[%s169] sm:$0xff]
        %v210 = vld [vmem:[%s179] sm:$0xf]
        %v211 = vcvt.f32.s32.to.zero.pseudo %v209
        %213 = vrot.lane.b32.xlu0 %v209, 2
        %v214 = vpop.permute.xlu0 %213
        %v216 = vsub.f32 %v209, %v214
        %218 = vrot.lane.b32.xlu0 %v216, 127
        %v219 = vpop.permute.xlu0 %218
        %v221 = vmul.f32 %v216, %v219
        %v223 = vrot.slane %v210, 6
        %v225 = vsub.f32 %v210, %v223
        %v227 = vrot.slane %v225, 1
        %v229 = vmul.f32 %v225, %v227
        %230 = vset.pattern.permute.xlu0 2
        %231 = vperm.xlu0 %230, %v209
        %v232 = vpop.permute.xlu0 %231
        %v234 = vperm.slane %v210, 2
        %v235 = vmin.f32 %v232, %v234
        %236 = vset.pattern.permute.xlu0 0
        %237 = vperm.xlu0 %236, %v209
        %v238 = vpop.permute.xlu0 %237
        %v240 = vperm.slane %v210, 0
        %v241 = vmax.f32 %v238, %v240
        %v242 = vsub.f32 %v235, %v241
        %v243 = vmax.f32 %v242, 0.0
        %244 = vset.pattern.permute.xlu0 3
        %245 = vperm.xlu0 %244, %v209
        %v246 = vpop.permute.xlu0 %245
        %v248 = vperm.slane %v210, 3
        %v249 = vmin.f32 %v246, %v248
        %250 = vset.pattern.permute.xlu0 1
        %251 = vperm.xlu0 %250, %v209
        %v252 = vpop.permute.xlu0 %251
        %v254 = vperm.slane %v210, 1
        %v255 = vmax.f32 %v252, %v254
        %v256 = vsub.f32 %v249, %v255
        %v257 = vmax.f32 %v256, 0.0
        %v258 = vmul.f32 %v243, %v257
        %260 = vset.pattern.permute.xlu0 2
        %261 = vperm.xlu0 %260, %v221
        %v262 = vpop.permute.xlu0 %261
        %v264 = vperm.slane %v229, 2
        %v265 = vadd.f32 %v262, %v264
        %v266 = vsub.f32 %v265, %v258
        %v267 = vmax.f32 %v266, 1e-09
        %v268 = vrcp.pop %v267
        %v269 = vmul.f32 %v267, %v268
        %v270 = vsub.f32 1.0, %v269
        %v271 = vmul.f32 %v268, %v270
        %v272 = vadd.f32 %v268, %v271
        %vm273 = vweird.f32 %v267
        %vm274 = vweird.f32 %v268
        %vm275 = vmor %vm273, %vm274
        %v276 = vsel %vm275, %v268, %v272
        %v277 = vand.u32 2147483647, %v267
        %vm278 = vcmp.eq.f32.partialorder %v277, 8.507059e+37
        %v279 = vand.u32 %v267, 2147483648
        %v280 = vor.u32 1.1754944e-38, %v279
        %v281 = vsel %vm278, %v280, %v276
        %v282 = vmul.f32 %v258, %v281
        %v283 = vrot.slane %v282, 4
        %v284 = vmax.f32 %v282, %v283
        %v285 = vrot.slane %v284, 2
        %v286 = vmax.f32 %v284, %v285
        %v287 = vrot.slane %v286, 1
        %v288 = vmax.f32 %v286, %v287
        %v289 = vlaneseq
        %v290 = vshrl.u32 %v289, 7
        %vm291 = vcmp.eq.f32.partialorder %v282, %v288
        %v292 = vmul.u32 %v290, 32
        %293 = vset.pattern.permute.xlu0 4
        %294 = vperm.xlu0 %293, %v211
        %v295 = vpop.permute.xlu0 %294
        %v296 = vadd.s32 %v292, %v295
        %v297 = vsel %vm291, %v296, 256
        %v298 = vrot.slane %v297, 4
        %vm299 = vcmp.lt.s32.totalorder %v297, %v298
        %v300 = vsel %vm299, %v297, %v298
        %v301 = vrot.slane %v300, 2
        %vm302 = vcmp.lt.s32.totalorder %v300, %v301
        %v303 = vsel %vm302, %v300, %v301
        %v304 = vrot.slane %v303, 1
        %vm305 = vcmp.lt.s32.totalorder %v303, %v304
        %v306 = vsel %vm305, %v303, %v304
        %v307 = vshra.s32 %v306, 5
        %v308 = vand.u32 %v306, 31
        %vm309 = vcmp.ge.f32.partialorder %v288, 0.5
        %v310 = vsel %vm309, 1, 0
        %vm311 = vcmp.eq.s32.totalorder %v310, 0
        %v312 = vsel %vm311, 20, %v308
        %vm313 = vcmp.eq.s32.totalorder %v290, 0
        %vm314 = vcmp.eq.s32.totalorder %v290, 1
        %vm315 = vcmp.eq.s32.totalorder %v290, 2
        %v316 = vsel %vm315, %v312, 0
        %v317 = vsel %vm314, %v310, %v316
        %v318 = vsel %vm313, %v307, %v317
        %319 = vst [vmem:[%s205] sm:$0xff] %v318
        %s320 = scalar_lea.vmem %s169, 8 [#allocation2]
        %v321 = vld [vmem:[%s320] sm:$0xff]
        %s322 = scalar_lea.vmem %s179, 4 [#allocation5]
        %v323 = vld [vmem:[%s322] sm:$0xf]
        %v324 = vcvt.f32.s32.to.zero.pseudo %v321
        %326 = vrot.lane.b32.xlu0 %v321, 2
        %v327 = vpop.permute.xlu0 %326
        %v329 = vsub.f32 %v321, %v327
        %331 = vrot.lane.b32.xlu0 %v329, 127
        %v332 = vpop.permute.xlu0 %331
        %v334 = vmul.f32 %v329, %v332
        %v336 = vrot.slane %v323, 6
        %v338 = vsub.f32 %v323, %v336
        %v340 = vrot.slane %v338, 1
        %v342 = vmul.f32 %v338, %v340
        %343 = vset.pattern.permute.xlu0 2
        %344 = vperm.xlu0 %343, %v321
        %v345 = vpop.permute.xlu0 %344
        %v347 = vperm.slane %v323, 2
        %v348 = vmin.f32 %v345, %v347
        %349 = vset.pattern.permute.xlu0 0
        %350 = vperm.xlu0 %349, %v321
        %v351 = vpop.permute.xlu0 %350
        %v353 = vperm.slane %v323, 0
        %v354 = vmax.f32 %v351, %v353
        %v355 = vsub.f32 %v348, %v354
        %v356 = vmax.f32 %v355, 0.0
        %357 = vset.pattern.permute.xlu0 3
        %358 = vperm.xlu0 %357, %v321
        %v359 = vpop.permute.xlu0 %358
        %v361 = vperm.slane %v323, 3
        %v362 = vmin.f32 %v359, %v361
        %363 = vset.pattern.permute.xlu0 1
        %364 = vperm.xlu0 %363, %v321
        %v365 = vpop.permute.xlu0 %364
        %v367 = vperm.slane %v323, 1
        %v368 = vmax.f32 %v365, %v367
        %v369 = vsub.f32 %v362, %v368
        %v370 = vmax.f32 %v369, 0.0
        %v371 = vmul.f32 %v356, %v370
        %373 = vset.pattern.permute.xlu0 2
        %374 = vperm.xlu0 %373, %v334
        %v375 = vpop.permute.xlu0 %374
        %v377 = vperm.slane %v342, 2
        %v378 = vadd.f32 %v375, %v377
        %v379 = vsub.f32 %v378, %v371
        %v380 = vmax.f32 %v379, 1e-09
        %v381 = vrcp.pop %v380
        %v382 = vmul.f32 %v380, %v381
        %v383 = vsub.f32 1.0, %v382
        %v384 = vmul.f32 %v381, %v383
        %v385 = vadd.f32 %v381, %v384
        %vm386 = vweird.f32 %v380
        %vm387 = vweird.f32 %v381
        %vm388 = vmor %vm386, %vm387
        %v389 = vsel %vm388, %v381, %v385
        %v390 = vand.u32 2147483647, %v380
        %vm391 = vcmp.eq.f32.partialorder %v390, 8.507059e+37
        %v392 = vand.u32 %v380, 2147483648
        %v393 = vor.u32 1.1754944e-38, %v392
        %v394 = vsel %vm391, %v393, %v389
        %v395 = vmul.f32 %v371, %v394
        %v396 = vrot.slane %v395, 4
        %v397 = vmax.f32 %v395, %v396
        %v398 = vrot.slane %v397, 2
        %v399 = vmax.f32 %v397, %v398
        %v400 = vrot.slane %v399, 1
        %v401 = vmax.f32 %v399, %v400
        %vm402 = vcmp.eq.f32.partialorder %v395, %v401
        %403 = vset.pattern.permute.xlu0 4
        %404 = vperm.xlu0 %403, %v324
        %v405 = vpop.permute.xlu0 %404
        %v406 = vadd.s32 %v292, %v405
        %v407 = vsel %vm402, %v406, 256
        %v408 = vrot.slane %v407, 4
        %vm409 = vcmp.lt.s32.totalorder %v407, %v408
        %v410 = vsel %vm409, %v407, %v408
        %v411 = vrot.slane %v410, 2
        %vm412 = vcmp.lt.s32.totalorder %v410, %v411
        %v413 = vsel %vm412, %v410, %v411
        %v414 = vrot.slane %v413, 1
        %vm415 = vcmp.lt.s32.totalorder %v413, %v414
        %v416 = vsel %vm415, %v413, %v414
        %v417 = vshra.s32 %v416, 5
        %v418 = vand.u32 %v416, 31
        %vm419 = vcmp.ge.f32.partialorder %v401, 0.5
        %v420 = vsel %vm419, 1, 0
        %vm421 = vcmp.eq.s32.totalorder %v420, 0
        %v422 = vsel %vm421, 20, %v418
        %v423 = vsel %vm315, %v422, 0
        %v424 = vsel %vm314, %v420, %v423
        %v425 = vsel %vm313, %v417, %v424
        %s426 = scalar_lea.vmem %s205, 8 [#allocation7]
        %427 = vst [vmem:[%s426] sm:$0xff] %v425
        %s428 = sand.u32 %s82, 1
        %s429 = scalar_lea.sflag [#allocation4], %s428
        %s430 = sand.u32 %s82, 1
        %s431 = smul.addr %s430, 16
        %s432 = scalar_lea.vmem [#allocation7], %s431
        // Predicated region
        $region37: #{tpu_custom_call.1} parent=27 // pred_check
          %p433 = pneg %p92
        $region38: #{tpu_custom_call.1} parent=27 // pred_check_branch
          %435 = sbr.rel (%p433) target = $region40
        $region39: #{tpu_custom_call.1} parent=27 // pred_region
          %s436 = smul.u32 2, %s22
          %438 = vsyncadd %s429, 0
          %s439 = smul.addr %s436, 8
          %s440 = scalar_lea.hbm %s2, %s439
          %s441 = sshll.u32 %s432, 4
          %s442 = int_to_ptr.vmem [resolvable:$true] %s441
          %s443 = sshll.u32 %s440, 4
          %s444 = int_to_ptr.hbm [resolvable:$true] %s443
          %449 = dma.vmem_to_hbm [thread:$0]  %s442, 256, %s444, %s429, 128, 128, 8
        $region40: #{tpu_custom_call.1} parent=27 // pred_fallthru
          _
      $region28: #{tpu_custom_call.1} parent=5 // pred_fallthru
        _
      %p450 = scmp.le.s32.totalorder 2, %s17
      // Predicated region
      $region41: #{tpu_custom_call.1} parent=5 // pred_check
        %p451 = pneg %p450
      $region42: #{tpu_custom_call.1} parent=5 // pred_check_branch
        %453 = sbr.rel (%p451) target = $region44
      $region43: #{tpu_custom_call.1} parent=5 // pred_region
        %s454 = ssub.s32 %s17, 2
        // Predicated region
        $region45: #{tpu_custom_call.1} parent=43 // pred_check
          %p455 = pneg %p98
        $region46: #{tpu_custom_call.1} parent=43 // pred_check_branch
          %457 = sbr.rel (%p455) target = $region48
        $region47: #{tpu_custom_call.1} parent=43 // pred_region
          %s458 = sand.u32 %s83, 1
          %s459 = scalar_lea.sflag [#allocation4], %s458
          %s460 = sand.u32 %s83, 1
          %s461 = smul.addr %s460, 16
          %s462 = scalar_lea.vmem [#allocation7], %s461
          %464 = dma.done %s459, 256
        $region48: #{tpu_custom_call.1} parent=43 // pred_fallthru
          _
      $region44: #{tpu_custom_call.1} parent=5 // pred_fallthru
        _
    $region6: #{tpu_custom_call.1} parent=1 // loop_footer
      %s21 = sadd.s32 1, %s17
    $region7: #{tpu_custom_call.1} parent=1 // loop_footer_branch
      %16 = sbr.rel target = $region3
    $region8: #{tpu_custom_call.1} parent=1 // loop_exit
      _
    %465 = vsyncpa [#allocation3], 1
    %s466 = scalar_lea.sflag [#allocation3], 1
    %467 = vsyncpa %s466, 1
    %468 = vsyncpa [#allocation6], 1
    %s469 = scalar_lea.sflag [#allocation6], 1
    %470 = vsyncpa %s469, 1
    %471 = vsyncpa [#allocation4], 1
    %s472 = scalar_lea.sflag [#allocation4], 1
    %473 = vsyncpa %s472, 1

</llo_original>
